<compile_context>
chip_gen: v6e
topology: v6e:2x2x1
jax: 0.10.0
libtpu: 0.0.40
codegen_flags: <defaults>
</compile_context>

<pallas_src>
import functools

import jax
import jax.numpy as jnp
from jax import lax
from jax.experimental import pallas as pl
from jax.experimental.pallas import tpu as pltpu

_SMEM = pl.BlockSpec(memory_space=pltpu.MemorySpace.SMEM)


# ---------------------------------------------------------------------------
# Single RHS evaluation (matches CompetitionModel.forward exactly).
# Packed SMEM layout: [t, y0, y1, a, b, c, d, ys0, ys1]
# ---------------------------------------------------------------------------
def competition_kernel(in_ref, out_ref):
    t = in_ref[0]
    a = in_ref[3]
    b = in_ref[4]
    c = in_ref[5]
    d = in_ref[6]

    # PyTorch: `if t == 0: y = self.ys`  ->  data-dependent select on t.
    use_ys = t == 0.0
    y0 = jnp.where(use_ys, in_ref[7], in_ref[1])
    y1 = jnp.where(use_ys, in_ref[8], in_ref[2])

    byy = b * y0 * y1                 # strength-reduced: reused below
    out_ref[0] = a * y0 - byy
    out_ref[1] = d * byy - c * y1


@jax.jit
def competition_forward(t, y, params, ys):
    """t: f32 scalar, y: (2,) f32, params: (4,) f32 [a,b,c,d], ys: (2,) f32."""
    packed = jnp.concatenate(
        [jnp.reshape(t, (1,)), y, params, ys]).astype(jnp.float32)
    return pl.pallas_call(
        competition_kernel,
        out_shape=jax.ShapeDtypeStruct((2,), jnp.float32),
        in_specs=[_SMEM],
        out_specs=_SMEM,
    )(packed)


# ---------------------------------------------------------------------------
# Fused time-stepping kernel: whole explicit-Euler loop in ONE pallas_call.
# Packed SMEM layout: [t0, dt, y0, y1, a, b, c, d, ys0, ys1]
# ---------------------------------------------------------------------------
def _make_integrate_kernel(num_steps):
    def kernel(in_ref, out_ref):
        t0 = in_ref[0]
        dt = in_ref[1]
        a = in_ref[4]
        b = in_ref[5]
        c = in_ref[6]
        d = in_ref[7]
        ys0 = in_ref[8]
        ys1 = in_ref[9]

        def rhs(t, y0, y1):
            use_ys = t == 0.0
            y0 = jnp.where(use_ys, ys0, y0)
            y1 = jnp.where(use_ys, ys1, y1)
            byy = b * y0 * y1
            return a * y0 - byy, d * byy - c * y1

        def body(_, carry):
            t, y0, y1 = carry
            dy0, dy1 = rhs(t, y0, y1)
            return (t + dt, y0 + dt * dy0, y1 + dt * dy1)

        _, y0, y1 = lax.fori_loop(
            0, num_steps, body, (t0, in_ref[2], in_ref[3]))
        out_ref[0] = y0
        out_ref[1] = y1

    return kernel


@functools.partial(jax.jit, static_argnames=("num_steps",))
def competition_integrate(t0, dt, y0, params, ys, *, num_steps):
    """One kernel launch for `num_steps` Euler steps of the competition RHS."""
    packed = jnp.concatenate(
        [jnp.reshape(t0, (1,)), jnp.reshape(dt, (1,)), y0, params, ys]
    ).astype(jnp.float32)
    return pl.pallas_call(
        _make_integrate_kernel(num_steps),
        out_shape=jax.ShapeDtypeStruct((2,), jnp.float32),
        in_specs=[_SMEM],
        out_specs=_SMEM,
    )(packed)


# ---------------------------------------------------------------------------
# Pure-JAX references (mirror the PyTorch module exactly).
# ---------------------------------------------------------------------------
def reference_forward(t, y, params, ys):
    a, b, c, d = params[0], params[1], params[2], params[3]
    y = jnp.where(t == 0.0, ys, y)
    y0, y1 = y[0], y[1]
    _y0 = a * y0 - b * y0 * y1
    _y1 = -1.0 * c * y1 + d * b * y0 * y1
    return jnp.stack([_y0, _y1])


def reference_integrate(t0, dt, y0, params, ys, num_steps):
    def body(_, carry):
        t, y = carry
        dy = reference_forward(t, y, params, ys)
        return (t + dt, y + dt * dy)

    _, y = lax.fori_loop(0, num_steps, body, (t0, y0))
    return y


if __name__ == "__main__":
    key = jax.random.PRNGKey(0)
    k_params, k_y = jax.random.split(key)

    # Parameters matching the module __init__: a,b,c,d ~ U[0,1); ys=[10, 5].
    params = jax.random.uniform(k_params, (4,), dtype=jnp.float32)
    ys = jnp.array([10.0, 5.0], dtype=jnp.float32)
    y_in = jax.random.uniform(k_y, (2,), dtype=jnp.float32) * 4.0 + 1.0

    # --- single RHS evaluation, both branches of `if t == 0` ----------------
    t0 = jnp.float32(0.0)
    t1 = jnp.float32(0.5)
    out_t0 = competition_forward(t0, y_in, params, ys)
    out_t1 = competition_forward(t1, y_in, params, ys)
    out_t0, out_t1 = jax.block_until_ready((out_t0, out_t1))

    ref_t0 = reference_forward(t0, y_in, params, ys)
    ref_t1 = reference_forward(t1, y_in, params, ys)
    assert jnp.allclose(out_t0, ref_t0, rtol=1e-5, atol=1e-5), (out_t0, ref_t0)
    assert jnp.allclose(out_t1, ref_t1, rtol=1e-5, atol=1e-5), (out_t1, ref_t1)

    # --- fused in-kernel Euler loop (32 RHS evals, one launch) --------------
    num_steps = 32
    dt = jnp.float32(1e-3)
    out_traj = competition_integrate(
        t0, dt, y_in, params, ys, num_steps=num_steps)
    out_traj = jax.block_until_ready(out_traj)

    ref_traj = reference_integrate(t0, dt, y_in, params, ys, num_steps)
    assert jnp.allclose(out_traj, ref_traj, rtol=1e-4, atol=1e-4), (
        out_traj, ref_traj)

    print("KERNEL_OK")
</pallas_src>

<mosaic_0001>
module attributes {stable_mosaic.version = 11 : i64} {
  func.func @competition_kernel(%arg0: memref<9xf32, #tpu.memory_space<smem>>, %arg1: memref<2xf32, #tpu.memory_space<smem>>) attributes {dimension_semantics = [], scalar_prefetch = 0 : i64, scratch_operands = 0 : i64, tpu.core_type = #tpu.core_type<tc>} {
    %c0 = arith.constant 0 : index
    %0 = memref.load %arg0[%c0] : memref<9xf32, #tpu.memory_space<smem>>
    %c3 = arith.constant 3 : index
    %1 = memref.load %arg0[%c3] : memref<9xf32, #tpu.memory_space<smem>>
    %c4 = arith.constant 4 : index
    %2 = memref.load %arg0[%c4] : memref<9xf32, #tpu.memory_space<smem>>
    %c5 = arith.constant 5 : index
    %3 = memref.load %arg0[%c5] : memref<9xf32, #tpu.memory_space<smem>>
    %c6 = arith.constant 6 : index
    %4 = memref.load %arg0[%c6] : memref<9xf32, #tpu.memory_space<smem>>
    %cst = arith.constant 0.000000e+00 : f32
    %5 = arith.cmpf oeq, %0, %cst : f32
    %c7 = arith.constant 7 : index
    %6 = memref.load %arg0[%c7] : memref<9xf32, #tpu.memory_space<smem>>
    %c1 = arith.constant 1 : index
    %7 = memref.load %arg0[%c1] : memref<9xf32, #tpu.memory_space<smem>>
    %8 = arith.select %5, %6, %7 : f32
    %c8 = arith.constant 8 : index
    %9 = memref.load %arg0[%c8] : memref<9xf32, #tpu.memory_space<smem>>
    %c2 = arith.constant 2 : index
    %10 = memref.load %arg0[%c2] : memref<9xf32, #tpu.memory_space<smem>>
    %11 = arith.select %5, %9, %10 : f32
    %12 = arith.mulf %2, %8 : f32
    %13 = arith.mulf %12, %11 : f32
    %14 = arith.mulf %1, %8 : f32
    %15 = arith.subf %14, %13 : f32
    %c0_0 = arith.constant 0 : index
    %16 = memref.load %arg1[%c0_0] : memref<2xf32, #tpu.memory_space<smem>>
    memref.store %15, %arg1[%c0_0] : memref<2xf32, #tpu.memory_space<smem>>
    %17 = arith.mulf %4, %13 : f32
    %18 = arith.mulf %3, %11 : f32
    %19 = arith.subf %17, %18 : f32
    %c1_1 = arith.constant 1 : index
    %20 = memref.load %arg1[%c1_1] : memref<2xf32, #tpu.memory_space<smem>>
    memref.store %19, %arg1[%c1_1] : memref<2xf32, #tpu.memory_space<smem>>
    return
  }
}

</mosaic_0001>

<llo_original>
// kernel: competition_forward.1
$region0: #{competition_forward.1}
  #allocation0 [shape = 'u32[]', space=smem, size = 0x4, offset = 0x4, fixed_abs, tag = 'smem constant byte address 0x4 - core index']
  #allocation1 [shape = 'u32[144,128]{1,0:T(1,128)}', space=vmem, size = 0x12000, scoped, tag = 'internal scratch']
  %s0 = inlined_call_operand.vmem [shape: f32[9], index: 0, kind: input, shape index: {}]
  %s1 = inlined_call_operand.hbm [shape: f32[2], index: 1, kind: output, shape index: {}]
  %s2 = sld [smem:[#allocation0]]
  $region18: #{competition_forward.1} parent=0
    _
  %s4 = ssub.s32 1, %s2
  %s5 = scalar_select 0, %s4, %s2
  $region1: #{competition_forward.1} parent=0
    #allocation2 [shape = 'u8[512]{0}', space=smem, size = 0x200, scoped, tag = 'input window, operand 0, single buffered']
    #allocation3 [shape = 's32[1]{0}', space=sflag, size = 0x4, scoped, tag = 'scoped memory for competition_forward.1']
    #allocation4 [shape = 's32[1]{0}', space=sflag, size = 0x4, scoped, tag = 'scoped memory for competition_forward.1']
    #allocation5 [shape = 'u8[512]{0}', space=smem, size = 0x200, scoped, tag = 'output window, operand 0, single buffered']
    %6 = vsyncpa [#allocation4], 0
    %7 = vsyncpa [#allocation3], 0
    // Predicated region
    $region2: #{competition_forward.1} parent=1 // pred_check
      _
    $region3: #{competition_forward.1} parent=1 // pred_check_branch
      %9 = sbr.rel (0) target = $region5
    $region4: #{competition_forward.1} parent=1 // pred_region
      %s11 = ssub.s32 16, 16
      %12 = vsyncadd [#allocation4], %s11
      %s14 = sshll.u32 %s0, 4
      %s15 = int_to_ptr.vmem [resolvable:$true] %s14
      %17 = dma.vmem_to_smem %s15, 16, [#allocation2], [#allocation4]
    $region5: #{competition_forward.1} parent=1 // pred_fallthru
      _
    // Predicated region
    $region6: #{competition_forward.1} parent=1 // pred_check
      _
    $region7: #{competition_forward.1} parent=1 // pred_check_branch
      %19 = sbr.rel (0) target = $region9
    $region8: #{competition_forward.1} parent=1 // pred_region
      %20 = dma.done [#allocation4], 16
    $region9: #{competition_forward.1} parent=1 // pred_fallthru
      _
    %21 = sfence
    %s22 = sld [smem:[#allocation2]]
    %s23 = sld [smem:[#allocation2 + $0x3]]
    %s24 = sld [smem:[#allocation2 + $0x4]]
    %s25 = sld [smem:[#allocation2 + $0x5]]
    %s26 = sld [smem:[#allocation2 + $0x6]]
    %p27 = scmp.eq.f32.partialorder %s22, 0.0
    %s28 = sld [smem:[#allocation2 + $0x7]]
    %s29 = sld [smem:[#allocation2 + $0x1]]
    %s30 = scalar_select %p27, %s28, %s29
    %s31 = sld [smem:[#allocation2 + $0x8]]
    %s32 = sld [smem:[#allocation2 + $0x2]]
    %s33 = scalar_select %p27, %s31, %s32
    %s34 = smul.f32 %s24, %s30
    %s35 = smul.f32 %s34, %s33
    %s36 = smul.f32 %s23, %s30
    %s37 = ssub.f32 %s36, %s35
    %s38 = scalar_lea.smem [#allocation5], 0
    %39 = sst [smem:[%s38]] %s37
    %s40 = smul.f32 %s26, %s35
    %s41 = smul.f32 %s25, %s33
    %s42 = ssub.f32 %s40, %s41
    %s43 = scalar_lea.smem [#allocation5], 1
    %44 = sst [smem:[%s43]] %s42
    // Predicated region
    $region10: #{competition_forward.1} parent=1 // pred_check
      _
    $region11: #{competition_forward.1} parent=1 // pred_check_branch
      %46 = sbr.rel (0) target = $region13
    $region12: #{competition_forward.1} parent=1 // pred_region
      %s48 = ssub.s32 16, 16
      %49 = vsyncadd [#allocation3], %s48
      %52 = dma.smem_to_hbm [#allocation5], 16, %s1, [#allocation3]
    $region13: #{competition_forward.1} parent=1 // pred_fallthru
      _
    // Predicated region
    $region14: #{competition_forward.1} parent=1 // pred_check
      _
    $region15: #{competition_forward.1} parent=1 // pred_check_branch
      %54 = sbr.rel (0) target = $region17
    $region16: #{competition_forward.1} parent=1 // pred_region
      %55 = dma.done [#allocation3], 16
    $region17: #{competition_forward.1} parent=1 // pred_fallthru
      _
    %56 = sfence
    %57 = vsyncpa [#allocation3], 1
    %58 = vsyncpa [#allocation4], 1

</llo_original>
